<compile_context>
chip_gen: v5e
topology: v5e:2x2
jax: 0.10.0
libtpu: 0.0.40
codegen_flags: <defaults>
</compile_context>

<pallas_src>
import functools

import jax
import jax.numpy as jnp
from jax.experimental import pallas as pl
from jax.experimental.pallas import tpu as pltpu


def _auc_loss_kernel(x_ref, lbl_ref, a_ref, b_ref, two_alpha_ref, ps_ref,
                     out_ref, *, use_sigmoid, n_valid, tile_n,
                     tiles_per_partial, needs_mask):
    t = pl.program_id(1)

    @pl.when(t == 0)
    def _():
        out_ref[...] = jnp.zeros_like(out_ref)

    x = x_ref[...].astype(jnp.float32)                 # (C, tile_n)

    if use_sigmoid:
        p = jax.nn.sigmoid(x)
    else:
        # softmax over the class (sublane) axis
        mx = jnp.max(x, axis=0, keepdims=True)
        e = jnp.exp(x - mx)
        p = e * pl.reciprocal(jnp.sum(e, axis=0, keepdims=True), approx=True)

    lbl = lbl_ref[...]                                 # (1, tile_n) int32
    cls = jax.lax.broadcasted_iota(jnp.int32, x.shape, 0)
    is_pos = cls == lbl                                # in-kernel one-hot

    a = a_ref[...].astype(jnp.float32)                 # (C, 1)
    b = b_ref[...].astype(jnp.float32)                 # (C, 1)
    two_alpha = two_alpha_ref[...].astype(jnp.float32)  # (C, 1)
    ps = ps_ref[...].astype(jnp.float32)               # (C, 1)
    one_m_ps = 1.0 - ps

    # Data-dependent part only (batch-independent constants added in wrapper):
    #   pos: (1-ps)*[(p-a)^2 - 2*alpha*p]
    #   neg:    ps *[(p-b)^2 + 2*alpha*p]
    pos_term = one_m_ps * ((p - a) ** 2 - two_alpha * p)
    neg_term = ps * ((p - b) ** 2 + two_alpha * p)
    elem = jnp.where(is_pos, pos_term, neg_term)

    if needs_mask:
        blk = pl.program_id(0) * tiles_per_partial + t
        col = blk * tile_n + jax.lax.broadcasted_iota(jnp.int32, (1, tile_n), 1)
        elem = jnp.where(col < n_valid, elem, 0.0)

    # Single global sum per tile, accumulated into the resident output block.
    out_ref[...] += jnp.sum(elem)


def auc_loss_forward(logits, target, a, b, alpha, ps, m=0.5, sigmoid=False,
                     square_loss=False, reduction="mean",
                     tile_n=512, num_partials=2):
    """AUC margin loss ('mean' reduction, stateless `ps` mode).

    logits: (N, C) float array (any float dtype; upcast to f32 in-kernel).
    target: (N,) integer class labels.
    a, b, alpha, ps: (C,) parameters / class priors.
    """
    if target.ndim != 1:
        raise NotImplementedError("kernel expects (N,) integer class labels")
        # TODO(synk): soft / (N, C) one-hot targets not supported.
    if reduction != "mean":
        raise NotImplementedError("only 'mean' reduction implemented")

    N, C = logits.shape
    margin = 1.0 if square_loss else float(m)

    # Lane-dense layout: classes -> sublanes, batch -> lanes.
    xT = logits.T                                      # (C, N), native dtype
    lbl = target.reshape(1, N).astype(jnp.int32)       # (1, N)

    # Tiling over the batch (lane) axis.
    if N <= tile_n:
        tile_n = N                                     # single full block
    else:
        tile_n = -(-tile_n // 128) * 128               # lane-aligned tile
    tiles_total = -(-N // tile_n)
    num_partials = max(1, min(num_partials, tiles_total))
    tiles_per_partial = -(-tiles_total // num_partials)
    padded_n = num_partials * tiles_per_partial * tile_n
    if padded_n != N:
        xT = jnp.pad(xT, ((0, 0), (0, padded_n - N)))
        lbl = jnp.pad(lbl, ((0, 0), (0, padded_n - N)))

    a_col = a.reshape(C, 1).astype(jnp.float32)
    b_col = b.reshape(C, 1).astype(jnp.float32)
    two_alpha_col = (2.0 * alpha).reshape(C, 1).astype(jnp.float32)
    ps_col = ps.reshape(C, 1).astype(jnp.float32)

    kernel = functools.partial(
        _auc_loss_kernel, use_sigmoid=sigmoid, n_valid=N, tile_n=tile_n,
        tiles_per_partial=tiles_per_partial, needs_mask=(padded_n != N))

    x_spec = pl.BlockSpec((C, tile_n),
                          lambda pi, ti: (0, pi * tiles_per_partial + ti))
    lbl_spec = pl.BlockSpec((1, tile_n),
                            lambda pi, ti: (0, pi * tiles_per_partial + ti))
    par_spec = pl.BlockSpec((C, 1), lambda pi, ti: (0, 0))
    # One lane-aligned (1,128) accumulator row per partial (avoids sub-(8,128)
    # output blocks and per-step HBM writeback of the scalar).
    out_spec = pl.BlockSpec((1, 128), lambda pi, ti: (0, pi))

    itemsize = jnp.dtype(logits.dtype).itemsize
    cost = pl.CostEstimate(
        flops=14 * N * C,
        transcendentals=N * C,
        bytes_accessed=N * C * itemsize + N * 4 + 4 * C * 4 + num_partials * 512)

    partials = pl.pallas_call(
        kernel,
        out_shape=jax.ShapeDtypeStruct((1, num_partials * 128), jnp.float32),
        grid=(num_partials, tiles_per_partial),
        in_specs=[x_spec, lbl_spec, par_spec, par_spec, par_spec, par_spec],
        out_specs=out_spec,
        compiler_params=pltpu.CompilerParams(
            dimension_semantics=("parallel", "arbitrary")),
        cost_estimate=cost,
    )(xT, lbl, a_col, b_col, two_alpha_col, ps_col)

    # Each partial's (1,128) row holds its sum broadcast across lanes.
    total = jnp.sum(partials.reshape(num_partials, 128)[:, 0])

    # Hoisted batch-independent terms: A3 + const(A4) = ps(1-ps)(2*alpha*m - alpha^2)
    ps_f = ps.astype(jnp.float32)
    al_f = alpha.astype(jnp.float32)
    const_mean = jnp.mean(ps_f * (1.0 - ps_f) * (2.0 * al_f * margin - al_f * al_f))

    return total / (N * C) + const_mean


def _reference(logits, target, a, b, alpha, ps, m=0.5, sigmoid=False):
    """Plain-JAX transcription of the PyTorch module ('mean' reduction)."""
    N, C = logits.shape
    x = logits.astype(jnp.float32)
    onehot = jax.nn.one_hot(target, C, dtype=jnp.float32)
    p = jax.nn.sigmoid(x) if sigmoid else jax.nn.softmax(x, axis=1)
    pos = (onehot == 1).astype(jnp.float32)
    neg = (onehot == 0).astype(jnp.float32)
    A1 = (1 - ps) * (p - a) ** 2 * pos
    A2 = ps * (p - b) ** 2 * neg
    A3 = -(1 - ps) * ps * alpha * alpha
    A4 = 2 * alpha * (ps * (1 - ps) * m + ps * p * neg - (1 - ps) * p * pos)
    return jnp.mean(jnp.mean(A1 + A2 + A3 + A4, axis=1))


if __name__ == "__main__":
    key = jax.random.PRNGKey(0)

    # --- Test 1: tiny shape matching the module's typical use (N=8, C=4) ---
    N, C = 8, 4
    k_x, k_t, k2_x, k2_t = jax.random.split(key, 4)
    logits = jax.random.normal(k_x, (N, C), dtype=jnp.float32)
    target = jax.random.randint(k_t, (N,), 0, C, dtype=jnp.int32)

    a = 0.01 * jnp.ones((C,), jnp.float32)        # nn.Parameter(0.01*ones(C))
    b = 0.01 * jnp.ones((C,), jnp.float32)
    alpha = 0.01 * jnp.ones((C,), jnp.float32)
    ps = jnp.array([0.1, 0.2, 0.3, 0.4], jnp.float32)   # list-of-priors mode

    loss = auc_loss_forward(logits, target, a, b, alpha, ps, m=0.5, sigmoid=False)
    loss = jax.block_until_ready(loss)
    ref = _reference(logits, target, a, b, alpha, ps, m=0.5, sigmoid=False)
    # 1e-4 tolerance covers the approx (EUP) reciprocal and tile-sum ordering.
    assert jnp.allclose(loss, ref, atol=1e-4, rtol=1e-4), (loss, ref)

    # --- Test 2: exercises batch tiling, padding mask, parallel partials and
    # native-bf16 input (N=300, C=5, tile_n=128, 2 partials) ---
    N2, C2 = 300, 5
    logits2 = jax.random.normal(k2_x, (N2, C2), dtype=jnp.float32).astype(jnp.bfloat16)
    target2 = jax.random.randint(k2_t, (N2,), 0, C2, dtype=jnp.int32)
    a2 = 0.01 * jnp.ones((C2,), jnp.float32)
    b2 = 0.01 * jnp.ones((C2,), jnp.float32)
    alpha2 = 0.01 * jnp.ones((C2,), jnp.float32)
    ps2 = jnp.full((C2,), 1.0 / C2, jnp.float32)

    loss2 = auc_loss_forward(logits2, target2, a2, b2, alpha2, ps2,
                             m=0.5, sigmoid=False, tile_n=128, num_partials=2)
    loss2 = jax.block_until_ready(loss2)
    ref2 = _reference(logits2, target2, a2, b2, alpha2, ps2, m=0.5, sigmoid=False)
    assert jnp.allclose(loss2, ref2, atol=1e-4, rtol=1e-4), (loss2, ref2)

    print("KERNEL_OK")
</pallas_src>

<mosaic_0001>
module attributes {stable_mosaic.version = 11 : i64} {
  func.func @_auc_loss_kernel(%arg0: i32, %arg1: i32, %arg2: memref<4x8xf32, #tpu.memory_space<vmem>>, %arg3: memref<1x8xi32, #tpu.memory_space<vmem>>, %arg4: memref<4x1xf32, #tpu.memory_space<vmem>>, %arg5: memref<4x1xf32, #tpu.memory_space<vmem>>, %arg6: memref<4x1xf32, #tpu.memory_space<vmem>>, %arg7: memref<4x1xf32, #tpu.memory_space<vmem>>, %arg8: memref<1x128xf32, #tpu.memory_space<vmem>>) attributes {dimension_semantics = [#tpu.dimension_semantics<parallel>, #tpu.dimension_semantics<arbitrary>], iteration_bounds = array<i64: 1, 1>, scalar_prefetch = 0 : i64, scratch_operands = 0 : i64, tpu.core_type = #tpu.core_type<tc>, window_params = [{transform_indices = @transform_0, window_bounds = array<i64: 4, 8>}, {transform_indices = @transform_1, window_bounds = array<i64: 1, 8>}, {pipeline_mode = #tpu.pipeline_mode<synchronous>, transform_indices = @transform_2, window_bounds = array<i64: 4, 1>}, {pipeline_mode = #tpu.pipeline_mode<synchronous>, transform_indices = @transform_3, window_bounds = array<i64: 4, 1>}, {pipeline_mode = #tpu.pipeline_mode<synchronous>, transform_indices = @transform_4, window_bounds = array<i64: 4, 1>}, {pipeline_mode = #tpu.pipeline_mode<synchronous>, transform_indices = @transform_5, window_bounds = array<i64: 4, 1>}, {transform_indices = @transform_6, window_bounds = array<i64: 1, 128>}]} {
    %c0_i32 = arith.constant 0 : i32
    %0 = arith.cmpi eq, %arg1, %c0_i32 : i32
    %1 = arith.extui %0 : i1 to i32
    %c0_i32_0 = arith.constant 0 : i32
    %2 = arith.cmpi ne, %1, %c0_i32_0 : i32
    scf.if %2 {
      %cst_19 = arith.constant 0.000000e+00 : f32
      %49 = vector.broadcast %cst_19 : f32 to vector<1x128xf32>
      %c0_20 = arith.constant 0 : index
      %c0_21 = arith.constant 0 : index
      %50 = vector.load %arg8[%c0_20, %c0_21] : memref<1x128xf32, #tpu.memory_space<vmem>>, vector<1x128xf32>
      tpu.vector_store %arg8[%c0_20, %c0_21], %49 {strides = array<i32>} : memref<1x128xf32, #tpu.memory_space<vmem>>, vector<1x128xf32>,
    } else {
    }
    %c0 = arith.constant 0 : index
    %c0_1 = arith.constant 0 : index
    %3 = vector.load %arg2[%c0, %c0_1] : memref<4x8xf32, #tpu.memory_space<vmem>>, vector<4x8xf32>
    %cst = arith.constant dense<0xFF800000> : vector<8xf32>
    %4 = vector.multi_reduction <maximumf>, %3, %cst [0] : vector<4x8xf32> to vector<8xf32>
    %5 = vector.shape_cast %4 : vector<8xf32> to vector<1x8xf32>
    %6 = vector.broadcast %5 : vector<1x8xf32> to vector<4x8xf32>
    %7 = arith.subf %3, %6 : vector<4x8xf32>
    %8 = math.exp %7 : vector<4x8xf32>
    %cst_2 = arith.constant dense<0.000000e+00> : vector<8xf32>
    %9 = vector.multi_reduction <add>, %8, %cst_2 [0] : vector<4x8xf32> to vector<8xf32>
    %10 = vector.shape_cast %9 : vector<8xf32> to vector<1x8xf32>
    %11 = tpu.reciprocal %10 {approx = true} : vector<1x8xf32> -> vector<1x8xf32>
    %12 = vector.broadcast %11 : vector<1x8xf32> to vector<4x8xf32>
    %13 = arith.mulf %8, %12 : vector<4x8xf32>
    %c0_3 = arith.constant 0 : index
    %c0_4 = arith.constant 0 : index
    %14 = vector.load %arg3[%c0_3, %c0_4] : memref<1x8xi32, #tpu.memory_space<vmem>>, vector<1x8xi32>
    %15 = tpu.iota {dimensions = array<i32: 0>} : vector<4x8xi32>
    %16 = vector.broadcast %14 : vector<1x8xi32> to vector<4x8xi32>
    %17 = arith.cmpi eq, %15, %16 : vector<4x8xi32>
    %c0_5 = arith.constant 0 : index
    %c0_6 = arith.constant 0 : index
    %18 = vector.load %arg4[%c0_5, %c0_6] : memref<4x1xf32, #tpu.memory_space<vmem>>, vector<4x1xf32>
    %c0_7 = arith.constant 0 : index
    %c0_8 = arith.constant 0 : index
    %19 = vector.load %arg5[%c0_7, %c0_8] : memref<4x1xf32, #tpu.memory_space<vmem>>, vector<4x1xf32>
    %c0_9 = arith.constant 0 : index
    %c0_10 = arith.constant 0 : index
    %20 = vector.load %arg6[%c0_9, %c0_10] : memref<4x1xf32, #tpu.memory_space<vmem>>, vector<4x1xf32>
    %c0_11 = arith.constant 0 : index
    %c0_12 = arith.constant 0 : index
    %21 = vector.load %arg7[%c0_11, %c0_12] : memref<4x1xf32, #tpu.memory_space<vmem>>, vector<4x1xf32>
    %cst_13 = arith.constant 1.000000e+00 : f32
    %22 = vector.broadcast %cst_13 : f32 to vector<4x1xf32>
    %23 = arith.subf %22, %21 : vector<4x1xf32>
    %24 = vector.broadcast %18 : vector<4x1xf32> to vector<4x8xf32>
    %25 = arith.subf %13, %24 : vector<4x8xf32>
    %26 = arith.mulf %25, %25 : vector<4x8xf32>
    %27 = vector.broadcast %20 : vector<4x1xf32> to vector<4x8xf32>
    %28 = arith.mulf %27, %13 : vector<4x8xf32>
    %29 = arith.subf %26, %28 : vector<4x8xf32>
    %30 = vector.broadcast %23 : vector<4x1xf32> to vector<4x8xf32>
    %31 = arith.mulf %30, %29 : vector<4x8xf32>
    %32 = vector.broadcast %19 : vector<4x1xf32> to vector<4x8xf32>
    %33 = arith.subf %13, %32 : vector<4x8xf32>
    %34 = arith.mulf %33, %33 : vector<4x8xf32>
    %35 = vector.broadcast %20 : vector<4x1xf32> to vector<4x8xf32>
    %36 = arith.mulf %35, %13 : vector<4x8xf32>
    %37 = arith.addf %34, %36 : vector<4x8xf32>
    %38 = vector.broadcast %21 : vector<4x1xf32> to vector<4x8xf32>
    %39 = arith.mulf %38, %37 : vector<4x8xf32>
    %40 = arith.select %17, %31, %39 : vector<4x8xi1>, vector<4x8xf32>
    %c0_14 = arith.constant 0 : index
    %c0_15 = arith.constant 0 : index
    %41 = vector.load %arg8[%c0_14, %c0_15] : memref<1x128xf32, #tpu.memory_space<vmem>>, vector<1x128xf32>
    %42 = vector.shape_cast %40 : vector<4x8xf32> to vector<1x4x8xf32>
    %cst_16 = arith.constant dense<0.000000e+00> : vector<1xf32>
    %43 = vector.multi_reduction <add>, %42, %cst_16 [1, 2] : vector<1x4x8xf32> to vector<1xf32>
    %44 = vector.shape_cast %43 : vector<1xf32> to vector<1x1x1xf32>
    %45 = vector.extract %44[0, 0, 0] : f32 from vector<1x1x1xf32>
    %46 = vector.broadcast %45 : f32 to vector<1x128xf32>
    %47 = arith.addf %41, %46 : vector<1x128xf32>
    %c0_17 = arith.constant 0 : index
    %c0_18 = arith.constant 0 : index
    %48 = vector.load %arg8[%c0_17, %c0_18] : memref<1x128xf32, #tpu.memory_space<vmem>>, vector<1x128xf32>
    tpu.vector_store %arg8[%c0_17, %c0_18], %47 {strides = array<i32>} : memref<1x128xf32, #tpu.memory_space<vmem>>, vector<1x128xf32>,
    return
  }
  func.func @transform_0(%arg0: i32, %arg1: i32) -> (i32, i32) {
    %c1_i32 = arith.constant 1 : i32
    %0 = arith.muli %arg0, %c1_i32 : i32
    %1 = arith.addi %0, %arg1 : i32
    %c0_i32 = arith.constant 0 : i32
    %c0_i32_0 = arith.constant 0 : i32
    return %c0_i32, %1 : i32, i32
  }
  func.func @transform_1(%arg0: i32, %arg1: i32) -> (i32, i32) {
    %c1_i32 = arith.constant 1 : i32
    %0 = arith.muli %arg0, %c1_i32 : i32
    %1 = arith.addi %0, %arg1 : i32
    %c0_i32 = arith.constant 0 : i32
    %c0_i32_0 = arith.constant 0 : i32
    return %c0_i32, %1 : i32, i32
  }
  func.func @transform_2(%arg0: i32, %arg1: i32) -> (i32, i32) {
    %c0_i32 = arith.constant 0 : i32
    %c0_i32_0 = arith.constant 0 : i32
    %c0_i32_1 = arith.constant 0 : i32
    return %c0_i32, %c0_i32_0 : i32, i32
  }
  func.func @transform_3(%arg0: i32, %arg1: i32) -> (i32, i32) {
    %c0_i32 = arith.constant 0 : i32
    %c0_i32_0 = arith.constant 0 : i32
    %c0_i32_1 = arith.constant 0 : i32
    return %c0_i32, %c0_i32_0 : i32, i32
  }
  func.func @transform_4(%arg0: i32, %arg1: i32) -> (i32, i32) {
    %c0_i32 = arith.constant 0 : i32
    %c0_i32_0 = arith.constant 0 : i32
    %c0_i32_1 = arith.constant 0 : i32
    return %c0_i32, %c0_i32_0 : i32, i32
  }
  func.func @transform_5(%arg0: i32, %arg1: i32) -> (i32, i32) {
    %c0_i32 = arith.constant 0 : i32
    %c0_i32_0 = arith.constant 0 : i32
    %c0_i32_1 = arith.constant 0 : i32
    return %c0_i32, %c0_i32_0 : i32, i32
  }
  func.func @transform_6(%arg0: i32, %arg1: i32) -> (i32, i32) {
    %c0_i32 = arith.constant 0 : i32
    %c0_i32_0 = arith.constant 0 : i32
    return %c0_i32, %arg0 : i32, i32
  }
}

</mosaic_0001>

<llo_original>
// kernel: tpu_custom_call.1
$region0: #{tpu_custom_call.1}
  #allocation0 [shape = 'u32[]', space=smem, size = 0x4, offset = 0x4, fixed_abs, tag = 'smem constant byte address 0x4 - core index']
  #allocation1 [shape = 'u32[72,128]{1,0:T(1,128)}', space=vmem, size = 0x9000, scoped, tag = 'internal scratch']
  %s0 = inlined_call_operand.vmem [shape: f32[4,8], index: 0, kind: input, shape index: {}]
  %s1 = inlined_call_operand.vmem [shape: s32[1,8], index: 1, kind: input, shape index: {}]
  %s2 = inlined_call_operand.vmem [shape: f32[4,1], index: 2, kind: input, shape index: {}]
  %s3 = inlined_call_operand.vmem [shape: f32[4,1], index: 3, kind: input, shape index: {}]
  %s4 = inlined_call_operand.vmem [shape: f32[4,1], index: 4, kind: input, shape index: {}]
  %s5 = inlined_call_operand.vmem [shape: f32[4,1], index: 5, kind: input, shape index: {}]
  %s6 = inlined_call_operand.hbm [shape: f32[1,128], index: 6, kind: output, shape index: {}]
  %s7 = sld [smem:[#allocation0]]
  $region38: #{tpu_custom_call.1} parent=0
    _
  %s9 = ssub.s32 1, %s7
  %s10 = scalar_select 0, %s9, %s7
  $region1: #{tpu_custom_call.1} parent=0
    #allocation2 [shape = 'u8[512]{0}', space=vmem, size = 0x400, scoped, tag = 'output window, operand 0, single buffered']
    #allocation3 [shape = 's32[1]{0}', space=sflag, size = 0x4, scoped, tag = 'scoped memory for tpu_custom_call.1']
    %11 = vsyncpa [#allocation3], 0
    // Predicated region
    $region2: #{tpu_custom_call.1} parent=1 // pred_check
      _
    $region3: #{tpu_custom_call.1} parent=1 // pred_check_branch
      %13 = sbr.rel (0) target = $region5
    $region4: #{tpu_custom_call.1} parent=1 // pred_region
      %s14 = sadd.s32 0, 0
      %p15 = scmp.lt.s32.totalorder %s14, 0
      %s16 = scalar_select %p15, %s14, 0
      %s17 = smul.addr %s16, 4
      %s18 = scalar_lea.vmem %s0, %s17
      %s19 = sadd.s32 0, 0
    $region5: #{tpu_custom_call.1} parent=1 // pred_fallthru
      _
    // Predicated region
    $region6: #{tpu_custom_call.1} parent=1 // pred_check
      _
    $region7: #{tpu_custom_call.1} parent=1 // pred_check_branch
      %21 = sbr.rel (0) target = $region9
    $region8: #{tpu_custom_call.1} parent=1 // pred_region
      %s22 = sadd.s32 0, 0
      %p23 = scmp.lt.s32.totalorder %s22, 0
      %s24 = scalar_select %p23, %s22, 0
      %s25 = scalar_lea.vmem %s1, %s24
      %s26 = sadd.s32 0, 0
    $region9: #{tpu_custom_call.1} parent=1 // pred_fallthru
      _
    // Predicated region
    $region10: #{tpu_custom_call.1} parent=1 // pred_check
      _
    $region11: #{tpu_custom_call.1} parent=1 // pred_check_branch
      %28 = sbr.rel (0) target = $region13
    $region12: #{tpu_custom_call.1} parent=1 // pred_region
      _
    $region13: #{tpu_custom_call.1} parent=1 // pred_fallthru
      _
    // Predicated region
    $region14: #{tpu_custom_call.1} parent=1 // pred_check
      _
    $region15: #{tpu_custom_call.1} parent=1 // pred_check_branch
      %30 = sbr.rel (0) target = $region17
    $region16: #{tpu_custom_call.1} parent=1 // pred_region
      _
    $region17: #{tpu_custom_call.1} parent=1 // pred_fallthru
      _
    // Predicated region
    $region18: #{tpu_custom_call.1} parent=1 // pred_check
      _
    $region19: #{tpu_custom_call.1} parent=1 // pred_check_branch
      %32 = sbr.rel (0) target = $region21
    $region20: #{tpu_custom_call.1} parent=1 // pred_region
      _
    $region21: #{tpu_custom_call.1} parent=1 // pred_fallthru
      _
    // Predicated region
    $region22: #{tpu_custom_call.1} parent=1 // pred_check
      _
    $region23: #{tpu_custom_call.1} parent=1 // pred_check_branch
      %34 = sbr.rel (0) target = $region25
    $region24: #{tpu_custom_call.1} parent=1 // pred_region
      _
    $region25: #{tpu_custom_call.1} parent=1 // pred_fallthru
      _
    %s35 = sadd.s32 0, 0
    %p36 = scmp.lt.s32.totalorder %s35, 0
    %s37 = scalar_select %p36, %s35, 0
    %s38 = smul.addr %s37, 4
    %s39 = scalar_lea.vmem %s0, %s38
    %s40 = sadd.s32 0, 0
    %p41 = scmp.lt.s32.totalorder %s40, 0
    %s42 = scalar_select %p41, %s40, 0
    %s43 = scalar_lea.vmem %s1, %s42
    %s44 = sadd.s32 0, 0
    %p45 = scmp.lt.s32.totalorder %s44, 0
    %s46 = scalar_select %p45, %s44, 0
    %s47 = smul.addr %s46, 4
    %s48 = scalar_lea.vmem %s0, %s47
    %s49 = sadd.s32 0, 0
    %s50 = sadd.s32 0, 0
    %p51 = scmp.lt.s32.totalorder %s50, 0
    %s52 = scalar_select %p51, %s50, 0
    %s53 = scalar_lea.vmem %s1, %s52
    %s54 = sadd.s32 0, 0
    %p55 = scmp.eq.s32.totalorder 0, 0
    // Predicated region
    $region26: #{tpu_custom_call.1} parent=1 // pred_check
      %p56 = pneg %p55
    $region27: #{tpu_custom_call.1} parent=1 // pred_check_branch
      %58 = sbr.rel (%p56) target = $region29
    $region28: #{tpu_custom_call.1} parent=1 // pred_region
      %59 = vst [vmem:[#allocation2] sm:$0x1] 0.0
    $region29: #{tpu_custom_call.1} parent=1 // pred_fallthru
      _
    %v60 = vld [vmem:[%s48] sm:$0xf]
    %vm61 = vcmask 60416
    %v62 = vsel %vm61, %v60, -inf
    %v63 = vrot.slane %v62, 4
    %v64 = vmax.f32 %v62, %v63
    %v65 = vrot.slane %v64, 2
    %v66 = vmax.f32 %v64, %v65
    %v67 = vrot.slane %v66, 1
    %v68 = vmax.f32 %v66, %v67
    %v69 = vsub.f32 %v60, %v68
    %v70 = vmul.f32 %v69, 1.442695
    %v71 = vpow.pop %v70
    %v72 = vsel %vm61, %v71, 0.0
    %v73 = vrot.slane %v72, 4
    %v74 = vadd.f32 %v72, %v73
    %v75 = vrot.slane %v74, 2
    %v76 = vadd.f32 %v74, %v75
    %v77 = vrot.slane %v76, 1
    %v78 = vadd.f32 %v76, %v77
    %v79 = vrcp.pop %v78
    %v80 = vmul.f32 %v71, %v79
    %v81 = vld [vmem:[%s53] sm:$0x1]
    %v82 = vlaneseq
    %v83 = vshrl.u32 %v82, 7
    %v84 = vperm.slane %v81, 0
    %vm85 = vcmp.eq.s32.totalorder %v83, %v84
    %v86 = vld [vmem:[%s2] sm:$0xf]
    %v87 = vld [vmem:[%s3] sm:$0xf]
    %v88 = vld [vmem:[%s4] sm:$0xf]
    %v89 = vld [vmem:[%s5] sm:$0xf]
    %v90 = vsub.f32 1.0, %v89
    %92 = vset.pattern.permute.xlu0 0
    %93 = vperm.xlu0 %92, %v86
    %v94 = vpop.permute.xlu0 %93
    %v96 = vsub.f32 %v80, %v94
    %v97 = vmul.f32 %v96, %v96
    %99 = vset.pattern.permute.xlu0 0
    %100 = vperm.xlu0 %99, %v88
    %v101 = vpop.permute.xlu0 %100
    %v103 = vmul.f32 %v101, %v80
    %v104 = vsub.f32 %v97, %v103
    %106 = vset.pattern.permute.xlu0 0
    %107 = vperm.xlu0 %106, %v90
    %v108 = vpop.permute.xlu0 %107
    %v110 = vmul.f32 %v108, %v104
    %112 = vset.pattern.permute.xlu0 0
    %113 = vperm.xlu0 %112, %v87
    %v114 = vpop.permute.xlu0 %113
    %v116 = vsub.f32 %v80, %v114
    %v117 = vmul.f32 %v116, %v116
    %v118 = vadd.f32 %v117, %v103
    %120 = vset.pattern.permute.xlu0 0
    %121 = vperm.xlu0 %120, %v89
    %v122 = vpop.permute.xlu0 %121
    %v124 = vmul.f32 %v122, %v118
    %v125 = vsel %vm85, %v110, %v124
    %v126 = vld [vmem:[#allocation2] sm:$0x1]
    %v127 = vsel %vm61, %v125, 0.0
    %128 = vadd.xlane.f32.xlu0 %v127
    %v129 = vpop.xlane.xlu0 %128
    %v130 = vrot.slane %v129, 4
    %v131 = vadd.f32 %v129, %v130
    %v132 = vrot.slane %v131, 2
    %v133 = vadd.f32 %v131, %v132
    %v134 = vrot.slane %v133, 1
    %v135 = vadd.f32 %v133, %v134
    %s136 = vtos %v135
    %v137 = vstv %s136
    %v138 = vadd.f32 %v126, %v137
    %139 = vst [vmem:[#allocation2] sm:$0x1] %v138
    // Predicated region
    $region30: #{tpu_custom_call.1} parent=1 // pred_check
      _
    $region31: #{tpu_custom_call.1} parent=1 // pred_check_branch
      %141 = sbr.rel (0) target = $region33
    $region32: #{tpu_custom_call.1} parent=1 // pred_region
      %143 = vsyncadd [#allocation3], 0
      %s145 = sshll.u32 [#allocation2], 4
      %s146 = int_to_ptr.vmem [resolvable:$true] %s145
      %s147 = sshll.u32 %s6, 4
      %s148 = int_to_ptr.hbm [resolvable:$true] %s147
      %150 = dma.vmem_to_hbm [thread:$0]  %s146, 16, %s148, [#allocation3]
    $region33: #{tpu_custom_call.1} parent=1 // pred_fallthru
      _
    // Predicated region
    $region34: #{tpu_custom_call.1} parent=1 // pred_check
      _
    $region35: #{tpu_custom_call.1} parent=1 // pred_check_branch
      %152 = sbr.rel (0) target = $region37
    $region36: #{tpu_custom_call.1} parent=1 // pred_region
      %154 = dma.done [#allocation3], 16
    $region37: #{tpu_custom_call.1} parent=1 // pred_fallthru
      _
    %155 = vsyncpa [#allocation3], 1

</llo_original>
